<compile_context>
chip_gen: v7x
topology: tpu7x:2x2x1
jax: 0.10.0
libtpu: 0.0.40
codegen_flags: <defaults>
</compile_context>

<pallas_src>
import functools

import jax
import jax.numpy as jnp
from jax.experimental import pallas as pl
from jax.experimental.pallas import tpu as pltpu


def _linear_kernel(x_ref, w_ref, o_ref, *, compute_dtype):
    # Single MXU matmul on the current batch tile:
    # (tb, in_dim) @ (in_dim, z_pad) with f32 accumulation.
    # Cast x here (not in the wrapper) so HBM only ever streams x once.
    x = x_ref[...].astype(compute_dtype)
    o_ref[...] = jnp.dot(
        x, w_ref[...], preferred_element_type=jnp.float32
    ).astype(o_ref.dtype)


def _round_up(n, m):
    return ((n + m - 1) // m) * m


def _vmem_budget_bytes():
    """Generation-aware VMEM budget (~75% of per-core capacity)."""
    try:
        return int(0.75 * pltpu.get_tpu_info().vmem_capacity_bytes)
    except Exception:
        pass
    try:
        kind = jax.devices()[0].device_kind.lower()
    except Exception:
        kind = ""
    if "v5" in kind or "v6" in kind:
        return 96 << 20   # 128 MiB physical on v5e/v6e
    return 48 << 20       # conservative: v7x has 64 MiB per TensorCore


def encoder_p2_forward(x, fc, *, tb=512, compute_dtype=jnp.bfloat16,
                       out_dtype=None, return_lane_padded=False):
    """Forward of Encoder_P2: x @ fc.

    x:  (B, in_dim)   float32 (or bf16)
    fc: (in_dim, z_dim)
    returns (B, z_dim) in `out_dtype` (default: x.dtype), or (B, z_pad) when
    return_lane_padded=True (z_pad = round_up(z_dim, 128)).
    """
    B, in_dim = x.shape
    in_dim_w, z_dim = fc.shape
    assert in_dim == in_dim_w
    out_dtype = x.dtype if out_dtype is None else out_dtype

    # ---- Lane-dense output: pad z_dim up to a multiple of 128 (weight only,
    # tiny & amortized). ----
    z_pad = _round_up(z_dim, 128)
    fc_p = fc if z_pad == z_dim else jnp.pad(fc, ((0, 0), (0, z_pad - z_dim)))
    w_c = fc_p.astype(compute_dtype)

    # ---- Batch tiling. No padding of x: partial final tile is masked by
    # Pallas (batch is independent per row, not a reduction axis). Cap the
    # tile so the grid has >= 2 steps -> megacore sharding on v7x. ----
    tb_eff = max(16, min(_round_up(tb, 16), _round_up(pl.cdiv(B, 2), 16)))

    x_itemsize = jnp.dtype(x.dtype).itemsize
    w_itemsize = jnp.dtype(compute_dtype).itemsize
    o_itemsize = jnp.dtype(out_dtype).itemsize

    budget = _vmem_budget_bytes()

    def footprint(t):
        # Double-buffered x tile + double-buffered (resident) weight +
        # double-buffered output tile.
        return (2 * t * in_dim * x_itemsize
                + 2 * in_dim * z_pad * w_itemsize
                + 2 * t * z_pad * o_itemsize)

    # Shrink the batch tile if the footprint would blow the (generation-aware)
    # VMEM budget. TODO(synk): for very large in_dim add a K grid axis
    # ("arbitrary") with an f32 VMEM accumulator instead of shrinking tb.
    while footprint(tb_eff) > budget and tb_eff > 16:
        tb_eff = max(16, _round_up(tb_eff // 2, 16))

    grid_b = pl.cdiv(B, tb_eff)
    vmem_limit = int(min(budget, max(8 << 20, 2 * footprint(tb_eff))))

    cost = pl.CostEstimate(
        flops=2 * B * in_dim * z_pad,
        bytes_accessed=(
            B * in_dim * x_itemsize
            + in_dim * z_pad * w_itemsize
            + B * z_pad * o_itemsize
        ),
        transcendentals=0,
    )

    kernel = functools.partial(_linear_kernel, compute_dtype=compute_dtype)

    out = pl.pallas_call(
        kernel,
        out_shape=jax.ShapeDtypeStruct((B, z_pad), out_dtype),
        grid_spec=pltpu.PrefetchScalarGridSpec(
            num_scalar_prefetch=0,
            grid=(grid_b,),
            in_specs=[
                pl.BlockSpec((tb_eff, in_dim), lambda i: (i, 0)),   # batch tile of x
                pl.BlockSpec((in_dim, z_pad), lambda i: (0, 0)),    # full (padded) weight, resident
            ],
            out_specs=pl.BlockSpec((tb_eff, z_pad), lambda i: (i, 0)),
        ),
        compiler_params=pltpu.CompilerParams(
            dimension_semantics=("parallel",),   # batch axis sharded across TCs on v7x
            vmem_limit_bytes=vmem_limit,
        ),
        cost_estimate=cost,
    )(x, w_c)

    if return_lane_padded or z_pad == z_dim:
        return out
    # Single lane slice back to the module's contract (avoid where possible by
    # passing return_lane_padded=True and slicing once at the end of the net).
    return out[:, :z_dim]


def make_orthogonal_fc(key, in_dim, z_dim):
    """Deterministic orthogonal init mirroring nn.init.orthogonal_(Tensor(z_dim, in_dim)).t().

    Result has shape (in_dim, z_dim) with orthonormal columns (since z_dim <= in_dim).
    """
    a = jax.random.normal(key, (in_dim, z_dim), dtype=jnp.float32)
    q, r = jnp.linalg.qr(a)                      # q: (in_dim, z_dim)
    d = jnp.sign(jnp.diagonal(r))
    q = q * d[None, :]
    return q.astype(jnp.float32)


if __name__ == "__main__":
    in_dim = 256
    z_dim = 64
    batch = 10   # deliberately not a multiple of the tile to exercise the masked-edge path

    key = jax.random.PRNGKey(0)
    kx, kw = jax.random.split(key)

    x = jax.random.normal(kx, (batch, in_dim), dtype=jnp.float32)
    fc = make_orthogonal_fc(kw, in_dim, z_dim)

    out = encoder_p2_forward(x, fc)
    out = jax.block_until_ready(out)
    assert out.shape == (batch, z_dim)
    assert out.dtype == x.dtype

    # Reference with the same bf16-in / f32-accumulate numerics as the kernel.
    ref_bf16 = jnp.dot(
        x.astype(jnp.bfloat16), fc.astype(jnp.bfloat16),
        preferred_element_type=jnp.float32,
    ).astype(jnp.float32)
    assert jnp.allclose(out, ref_bf16, atol=1e-3, rtol=1e-3)

    # Loose sanity check against the full-f32 reference (bf16 input rounding).
    ref_f32 = x @ fc
    assert jnp.allclose(out, ref_f32, atol=5e-2, rtol=5e-2)

    print("KERNEL_OK")
</pallas_src>

<mosaic_0001>
module attributes {stable_mosaic.version = 11 : i64} {
  func.func @_linear_kernel(%arg0: i32, %arg1: memref<16x256xf32, #tpu.memory_space<vmem>>, %arg2: memref<256x128xbf16, #tpu.memory_space<vmem>>, %arg3: memref<16x128xf32, #tpu.memory_space<vmem>>) attributes {dimension_semantics = [#tpu.dimension_semantics<parallel>], iteration_bounds = array<i64: 1>, scalar_prefetch = 0 : i64, scratch_operands = 0 : i64, tpu.core_type = #tpu.core_type<tc>, window_params = [{transform_indices = @transform_0, window_bounds = array<i64: 16, 256>}, {pipeline_mode = #tpu.pipeline_mode<synchronous>, transform_indices = @transform_1, window_bounds = array<i64: 256, 128>}, {transform_indices = @transform_2, window_bounds = array<i64: 16, 128>}]} {
    %c0 = arith.constant 0 : index
    %c0_0 = arith.constant 0 : index
    %0 = vector.load %arg1[%c0, %c0_0] : memref<16x256xf32, #tpu.memory_space<vmem>>, vector<16x256xf32>
    %1 = arith.truncf %0 : vector<16x256xf32> to vector<16x256xbf16>
    %c0_1 = arith.constant 0 : index
    %c0_2 = arith.constant 0 : index
    %2 = vector.load %arg2[%c0_1, %c0_2] : memref<256x128xbf16, #tpu.memory_space<vmem>>, vector<256x128xbf16>
    %cst = arith.constant dense<0.000000e+00> : vector<16x128xf32>
    %3 = tpu.matmul %1, %2, %cst {dimension_numbers = #tpu.dot_dimension_numbers<[1], [0], [0], [1], [0, 0, 1, 1], [], []>} : vector<16x256xbf16>, vector<256x128xbf16>, vector<16x128xf32> -> vector<16x128xf32>
    %c0_3 = arith.constant 0 : index
    %c0_4 = arith.constant 0 : index
    %4 = vector.load %arg3[%c0_3, %c0_4] : memref<16x128xf32, #tpu.memory_space<vmem>>, vector<16x128xf32>
    tpu.vector_store %arg3[%c0_3, %c0_4], %3 {strides = array<i32>} : memref<16x128xf32, #tpu.memory_space<vmem>>, vector<16x128xf32>,
    return
  }
  func.func @transform_0(%arg0: i32) -> (i32, i32) {
    %c0_i32 = arith.constant 0 : i32
    %c0_i32_0 = arith.constant 0 : i32
    return %arg0, %c0_i32 : i32, i32
  }
  func.func @transform_1(%arg0: i32) -> (i32, i32) {
    %c0_i32 = arith.constant 0 : i32
    %c0_i32_0 = arith.constant 0 : i32
    %c0_i32_1 = arith.constant 0 : i32
    return %c0_i32, %c0_i32_0 : i32, i32
  }
  func.func @transform_2(%arg0: i32) -> (i32, i32) {
    %c0_i32 = arith.constant 0 : i32
    %c0_i32_0 = arith.constant 0 : i32
    return %arg0, %c0_i32 : i32, i32
  }
}

</mosaic_0001>

<llo_original>
// kernel: tpu_custom_call.1
$region0: #{tpu_custom_call.1}
  #allocation0 [shape = 'u32[]', space=smem, size = 0x4, offset = 0x4, fixed_abs, tag = 'smem constant byte address 0x4 - core index']
  #allocation1 [shape = 'u32[144,128]{1,0:T(1,128)}', space=vmem, size = 0x12000, scoped, tag = 'internal scratch']
  %s0 = inlined_call_operand.hbm [shape: f32[10,256], index: 0, kind: input, shape index: {}]
  %s1 = inlined_call_operand.hbm [shape: bf16[256,128], index: 1, kind: input, shape index: {}]
  %s2 = inlined_call_operand.hbm [shape: f32[10,128], index: 2, kind: output, shape index: {}]
  %s3 = sld [smem:[#allocation0]]
  $region26: #{tpu_custom_call.1} parent=0
    _
  %s5 = ssub.s32 1, %s3
  %s6 = scalar_select 0, %s5, %s3
  $region1: #{tpu_custom_call.1} parent=0
    #allocation2 [shape = 'u8[16384]{0}', space=vmem, size = 0x4000, scoped, tag = 'input window, operand 0, single buffered']
    #allocation3 [shape = 's32[1]{0}', space=sflag, size = 0x4, scoped, tag = 'scoped memory for tpu_custom_call.1']
    #allocation4 [shape = 's32[1]{0}', space=sflag, size = 0x4, scoped, tag = 'scoped memory for tpu_custom_call.1']
    #allocation5 [shape = 'u8[65536]{0}', space=vmem, size = 0x10000, scoped, tag = 'input window, operand 1, single buffered']
    #allocation6 [shape = 's32[1]{0}', space=sflag, size = 0x4, scoped, tag = 'scoped memory for tpu_custom_call.1']
    #allocation7 [shape = 'u8[8192]{0}', space=vmem, size = 0x2000, scoped, tag = 'output window, operand 0, single buffered']
    %7 = vsyncpa [#allocation3], 0
    %8 = vsyncpa [#allocation6], 0
    %9 = vsyncpa [#allocation4], 0
    // Predicated region
    $region2: #{tpu_custom_call.1} parent=1 // pred_check
      _
    $region3: #{tpu_custom_call.1} parent=1 // pred_check_branch
      %11 = sbr.rel (0) target = $region5
    $region4: #{tpu_custom_call.1} parent=1 // pred_region
      %s13 = ssub.s32 512, 512
      %14 = vsyncadd [#allocation3], %s13
      %s15 = sshll.u32 [#allocation2], 4
      %s16 = int_to_ptr.vmem [resolvable:$true] %s15
      %21 = dma.hbm_to_vmem [thread:$0]  %s0, 512, %s16, [#allocation3], 256, 256, 16
    $region5: #{tpu_custom_call.1} parent=1 // pred_fallthru
      _
    // Predicated region
    $region6: #{tpu_custom_call.1} parent=1 // pred_check
      _
    $region7: #{tpu_custom_call.1} parent=1 // pred_check_branch
      %23 = sbr.rel (0) target = $region9
    $region8: #{tpu_custom_call.1} parent=1 // pred_region
      %s25 = ssub.s32 2048, 2048
      %26 = vsyncadd [#allocation6], %s25
      %s27 = sshll.u32 [#allocation5], 4
      %s28 = int_to_ptr.vmem [resolvable:$true] %s27
      %33 = dma.hbm_to_vmem [thread:$0]  %s1, 2048, %s28, [#allocation6], 64, 64, 4
    $region9: #{tpu_custom_call.1} parent=1 // pred_fallthru
      _
    // Predicated region
    $region10: #{tpu_custom_call.1} parent=1 // pred_check
      _
    $region11: #{tpu_custom_call.1} parent=1 // pred_check_branch
      %35 = sbr.rel (0) target = $region13
    $region12: #{tpu_custom_call.1} parent=1 // pred_region
      %36 = dma.done [#allocation3], 512
    $region13: #{tpu_custom_call.1} parent=1 // pred_fallthru
      _
    // Predicated region
    $region14: #{tpu_custom_call.1} parent=1 // pred_check
      _
    $region15: #{tpu_custom_call.1} parent=1 // pred_check_branch
      %38 = sbr.rel (0) target = $region17
    $region16: #{tpu_custom_call.1} parent=1 // pred_region
      %39 = dma.done [#allocation6], 2048
    $region17: #{tpu_custom_call.1} parent=1 // pred_fallthru
      _
    %v41 = vld [vmem:[#allocation2] sm:$0xff]
    %v42 = vld [vmem:[#allocation2 + $0x8] sm:$0xff]
    %v43 = vld [vmem:[#allocation2 + $0x10] sm:$0xff]
    %v44 = vld [vmem:[#allocation2 + $0x18] sm:$0xff]
    %v45 = vpack.c.bf16 %v43, %v41
    %v46 = vpack.c.bf16 %v44, %v42
    %v47 = vld [vmem:[#allocation5] sm:$0xf]
    %v48 = vld [vmem:[#allocation5 + $0x4] sm:$0xf]
    %v49 = vld [vmem:[#allocation5 + $0x8] sm:$0xf]
    %v50 = vld [vmem:[#allocation5 + $0xc] sm:$0xf]
    %v51 = vld [vmem:[#allocation5 + $0x10] sm:$0xf]
    %v52 = vld [vmem:[#allocation5 + $0x14] sm:$0xf]
    %v53 = vld [vmem:[#allocation5 + $0x18] sm:$0xf]
    %v54 = vld [vmem:[#allocation5 + $0x1c] sm:$0xf]
    %v55 = vld [vmem:[#allocation5 + $0x20] sm:$0xf]
    %v56 = vld [vmem:[#allocation5 + $0x24] sm:$0xf]
    %v57 = vld [vmem:[#allocation5 + $0x28] sm:$0xf]
    %v58 = vld [vmem:[#allocation5 + $0x2c] sm:$0xf]
    %v59 = vld [vmem:[#allocation5 + $0x30] sm:$0xf]
    %v60 = vld [vmem:[#allocation5 + $0x34] sm:$0xf]
    %v61 = vld [vmem:[#allocation5 + $0x38] sm:$0xf]
    %v62 = vld [vmem:[#allocation5 + $0x3c] sm:$0xf]
    %v63 = vld [vmem:[#allocation5 + $0x40] sm:$0xf]
    %v64 = vld [vmem:[#allocation5 + $0x44] sm:$0xf]
    %v65 = vld [vmem:[#allocation5 + $0x48] sm:$0xf]
    %v66 = vld [vmem:[#allocation5 + $0x4c] sm:$0xf]
    %v67 = vld [vmem:[#allocation5 + $0x50] sm:$0xf]
    %v68 = vld [vmem:[#allocation5 + $0x54] sm:$0xf]
    %v69 = vld [vmem:[#allocation5 + $0x58] sm:$0xf]
    %v70 = vld [vmem:[#allocation5 + $0x5c] sm:$0xf]
    %v71 = vld [vmem:[#allocation5 + $0x60] sm:$0xf]
    %v72 = vld [vmem:[#allocation5 + $0x64] sm:$0xf]
    %v73 = vld [vmem:[#allocation5 + $0x68] sm:$0xf]
    %v74 = vld [vmem:[#allocation5 + $0x6c] sm:$0xf]
    %v75 = vld [vmem:[#allocation5 + $0x70] sm:$0xf]
    %v76 = vld [vmem:[#allocation5 + $0x74] sm:$0xf]
    %v77 = vld [vmem:[#allocation5 + $0x78] sm:$0xf]
    %v78 = vld [vmem:[#allocation5 + $0x7c] sm:$0xf]
    %v111 = vunpack.c.l.b16 %v47
    %v112 = vunpack.c.l.b16 %v48
    %v113 = vunpack.c.l.b16 %v49
    %v114 = vunpack.c.l.b16 %v50
    %v115 = vunpack.c.l.b16 %v51
    %v116 = vunpack.c.l.b16 %v52
    %v117 = vunpack.c.l.b16 %v53
    %v118 = vunpack.c.l.b16 %v54
    %v119 = vunpack.c.l.b16 %v55
    %v120 = vunpack.c.l.b16 %v56
    %v121 = vunpack.c.l.b16 %v57
    %v122 = vunpack.c.l.b16 %v58
    %v123 = vunpack.c.l.b16 %v59
    %v124 = vunpack.c.l.b16 %v60
    %v125 = vunpack.c.l.b16 %v61
    %v126 = vunpack.c.l.b16 %v62
    %v127 = vunpack.c.l.b16 %v63
    %v128 = vunpack.c.l.b16 %v64
    %v129 = vunpack.c.l.b16 %v65
    %v130 = vunpack.c.l.b16 %v66
    %v131 = vunpack.c.l.b16 %v67
    %v132 = vunpack.c.l.b16 %v68
    %v133 = vunpack.c.l.b16 %v69
    %v134 = vunpack.c.l.b16 %v70
    %v135 = vunpack.c.l.b16 %v71
    %v136 = vunpack.c.l.b16 %v72
    %v137 = vunpack.c.l.b16 %v73
    %v138 = vunpack.c.l.b16 %v74
    %v139 = vunpack.c.l.b16 %v75
    %v140 = vunpack.c.l.b16 %v76
    %v141 = vunpack.c.l.b16 %v77
    %v142 = vunpack.c.l.b16 %v78
    %v143 = vpack.c.b16 %v112, %v111
    %v144 = vpack.c.b16 %v114, %v113
    %v145 = vpack.c.b16 %v116, %v115
    %v146 = vpack.c.b16 %v118, %v117
    %v147 = vpack.c.b16 %v120, %v119
    %v148 = vpack.c.b16 %v122, %v121
    %v149 = vpack.c.b16 %v124, %v123
    %v150 = vpack.c.b16 %v126, %v125
    %v151 = vpack.c.b16 %v128, %v127
    %v152 = vpack.c.b16 %v130, %v129
    %v153 = vpack.c.b16 %v132, %v131
    %v154 = vpack.c.b16 %v134, %v133
    %v155 = vpack.c.b16 %v136, %v135
    %v156 = vpack.c.b16 %v138, %v137
    %v157 = vpack.c.b16 %v140, %v139
    %v158 = vpack.c.b16 %v142, %v141
    %175 = vmatprep.subr.bf16.mxu0 0
    %176 = vmatpush1.bf16.msra.mxu0 %v143
    %177 = vmatprep.subr.bf16.mxu0 0
    %178 = vmatpush1.bf16.msra.mxu0 %v144
    %179 = vmatprep.subr.bf16.mxu0 0
    %180 = vmatpush1.bf16.msra.mxu0 %v145
    %181 = vmatprep.subr.bf16.mxu0 0
    %182 = vmatpush1.bf16.msra.mxu0 %v146
    %183 = vmatprep.subr.bf16.mxu0 0
    %184 = vmatpush1.bf16.msra.mxu0 %v147
    %185 = vmatprep.subr.bf16.mxu0 0
    %186 = vmatpush1.bf16.msra.mxu0 %v148
    %187 = vmatprep.subr.bf16.mxu0 0
    %188 = vmatpush1.bf16.msra.mxu0 %v149
    %189 = vmatprep.subr.bf16.mxu0 0
    %190 = vmatpush1.bf16.msra.mxu0 %v150
    %191 = vmatprep.subr.bf16.mxu0 0
    %192 = vmatpush1.bf16.msra.mxu0 %v151
    %193 = vmatprep.subr.bf16.mxu0 0
    %194 = vmatpush1.bf16.msra.mxu0 %v152
    %195 = vmatprep.subr.bf16.mxu0 0
    %196 = vmatpush1.bf16.msra.mxu0 %v153
    %197 = vmatprep.subr.bf16.mxu0 0
    %198 = vmatpush1.bf16.msra.mxu0 %v154
    %199 = vmatprep.subr.bf16.mxu0 0
    %200 = vmatpush1.bf16.msra.mxu0 %v155
    %201 = vmatprep.subr.bf16.mxu0 0
    %202 = vmatpush1.bf16.msra.mxu0 %v156
    %203 = vmatprep.subr.bf16.mxu0 0
    %204 = vmatpush1.bf16.msra.mxu0 %v157
    %205 = vmatprep.subr.bf16.mxu0 0
    %206 = vmatpush1.bf16.msra.mxu0 %v158
    %207 = vmatprep.mubr.bf16.mxu0 %v46
    %208 = vmatmul.mubr.bf16.gmra.mrb[0].mxu0 %v45
    %v209 = vpop.f32.mrb[0].mxu0
    %v210 = vadd.f32 0.0, %v209
    %v211 = vpop.f32.mrb[0].mxu0
    %v212 = vpop.f32.mrb[0].mxu0
    %v213 = vadd.f32 0.0, %v212
    %v214 = vpop.f32.mrb[0].mxu0
    %215 = vdwg.mxu0
    %216 = vst [vmem:[#allocation7] sm:$0xff] %v210
    %217 = vst [vmem:[#allocation7 + $0x8] sm:$0xff] %v213
    // Predicated region
    $region18: #{tpu_custom_call.1} parent=1 // pred_check
      _
    $region19: #{tpu_custom_call.1} parent=1 // pred_check_branch
      %219 = sbr.rel (0) target = $region21
    $region20: #{tpu_custom_call.1} parent=1 // pred_region
      %s221 = ssub.s32 256, 256
      %222 = vsyncadd [#allocation4], %s221
      %s223 = sshll.u32 [#allocation7], 4
      %s224 = int_to_ptr.vmem [resolvable:$true] %s223
      %229 = dma.vmem_to_hbm [thread:$0]  %s224, 256, %s2, [#allocation4], 128, 128, 8
    $region21: #{tpu_custom_call.1} parent=1 // pred_fallthru
      _
    // Predicated region
    $region22: #{tpu_custom_call.1} parent=1 // pred_check
      _
    $region23: #{tpu_custom_call.1} parent=1 // pred_check_branch
      %231 = sbr.rel (0) target = $region25
    $region24: #{tpu_custom_call.1} parent=1 // pred_region
      %232 = dma.done [#allocation4], 256
    $region25: #{tpu_custom_call.1} parent=1 // pred_fallthru
      _
    %233 = vsyncpa [#allocation3], 1
    %234 = vsyncpa [#allocation6], 1
    %235 = vsyncpa [#allocation4], 1

</llo_original>
